<compile_context>
chip_gen: v7x
topology: tpu7x:2x2x1
jax: 0.10.0
libtpu: 0.0.40
codegen_flags: <defaults>
</compile_context>

<pallas_src>
import functools

import jax
import jax.numpy as jnp
from jax.experimental import pallas as pl
from jax.experimental.pallas import tpu as pltpu

KH = KW = 3
CIN = 3
COUT = 3


def _conv3x3_tanh_kernel(x_ref, w_ref, b_ref, o_ref, acc_ref, *, H, W, BN):
    """Fused 3x3 SAME conv + bias + tanh on a sublane-stacked, lane-dense layout.

    x_ref:   VMEM (BN*CIN, H*W)            f32  -- batch & input channels stacked
                                                   on sublanes, spatial on lanes
    w_ref:   VMEM (COUT*KH*KW, BN*CIN, 1)  f32  -- per-sublane weight vectors
    b_ref:   SMEM (COUT,)                  f32
    o_ref:   VMEM (BN, COUT, H*W)          f32
    acc_ref: VMEM (COUT, BN*CIN, H*W)      f32  -- scratch for the CIN reduction
    """
    HW = H * W
    BNC = BN * CIN

    # Single lane-dense load of the whole stacked input tile.
    x = x_ref[...]                                           # (BNC, HW)

    # Hoisted parameter reads (nothing is re-read inside the unrolled body).
    wvecs = [w_ref[t] for t in range(COUT * KH * KW)]        # each (BNC, 1)
    b_list = [b_ref[co] for co in range(COUT)]

    # Row / column of every flattened spatial position, for the SAME border
    # masks.  Shift/AND fast path for power-of-two W (no hardware int div).
    pos = jax.lax.broadcasted_iota(jnp.int32, (BNC, HW), 1)
    if (W & (W - 1)) == 0:
        row = pos >> (W.bit_length() - 1)
        col = pos & (W - 1)
    else:
        # TODO(synk): non-pow2 W falls back to integer div/mod (long VALU
        # sequence); precompute a (KH*KW, HW) mask input instead if needed.
        row = pos // W
        col = pos % W

    # Only the four non-trivial validity conditions are materialised.
    row_ok = {-1: row >= 1, 0: None, 1: row < (H - 1)}
    col_ok = {-1: col >= 1, 0: None, 1: col < (W - 1)}

    accs = [jnp.zeros((BNC, HW), jnp.float32) for _ in range(COUT)]

    # 9 shared taps (1 roll + <=1 select each), 27 multiply-accumulates.
    # Wrapped lanes from the roll are always masked off because any lane wrap
    # necessarily crosses a row/column border (requires 3x3 taps, H,W >= 2;
    # asserted in the wrapper).
    for kh in range(KH):
        dh = kh - 1
        for kw in range(KW):
            dw = kw - 1
            s = dh * W + dw                 # tap offset on the flat spatial axis
            shift = (-s) % HW               # static, non-negative roll amount
            rolled = x if shift == 0 else pltpu.roll(x, shift, 1)
            rm, cm = row_ok[dh], col_ok[dw]
            if rm is None and cm is None:
                tap = rolled                # centre tap: always valid, no select
            else:
                if rm is None:
                    m = cm
                elif cm is None:
                    m = rm
                else:
                    m = jnp.logical_and(rm, cm)
                tap = jnp.where(m, rolled, 0.0)
            t = kh * KW + kw
            for co in range(COUT):
                # (BNC, 1) weight vector broadcasts along lanes: one vmul+vadd
                # per output channel covers every stacked (n, ci) sublane.
                accs[co] = accs[co] + tap * wvecs[co * KH * KW + t]

    # Epilogue: stash the stacked accumulators, then reduce each CIN group via
    # plain ref row loads, add bias, tanh, and store lane-dense output rows.
    for co in range(COUT):
        acc_ref[co, :, :] = accs[co]
    for n in range(BN):
        for co in range(COUT):
            red = acc_ref[co, n * CIN, :]
            for ci in range(1, CIN):
                red = red + acc_ref[co, n * CIN + ci, :]
            o_ref[n, co, :] = jnp.tanh(red + b_list[co])


def dummy_cnn_forward(x, weight, bias, *, batch_block=None):
    """x: (N, 3, H, W) f32, weight: (3, 3, 3, 3) f32 (PyTorch layout), bias: (3,) f32."""
    N, Cin, H, W = x.shape
    assert Cin == CIN
    assert KH == 3 and KW == 3
    assert H >= 2 and W >= 2, "roll+mask SAME-border handling requires H, W >= 2"
    HW = H * W
    assert HW % 128 == 0, (
        "flattened spatial dim must be a multiple of 128 for lane-dense "
        "(unmasked) loads/stores; pad H*W in the caller otherwise")

    if batch_block is None:
        batch_block = N        # single grid step for small batches (per-step
                               # overhead dominates at toy sizes); set N//2 on
                               # v7x when there is real work for both cores.
    assert N % batch_block == 0
    assert batch_block == N or (batch_block * CIN) % 8 == 0, (
        "sub-batch blocks must keep the stacked sublane dim 8-aligned")

    # Free (metadata-only) reshape: (N, CIN, H, W) -> (N*CIN, H*W); batch and
    # input channels land on sublanes, spatial on lanes.  No padding is ever
    # materialised (no extra HBM round trip).
    x_flat = x.reshape(N * CIN, HW).astype(jnp.float32)

    # Per-sublane weight vectors:
    #   w_sub[co*9 + kh*3 + kw, n*CIN + ci, 0] == weight[co, ci, kh, kw]
    # (batch-replicated so one vmul covers all stacked sublanes).  Tiny.
    w_t = jnp.transpose(weight.astype(jnp.float32), (0, 2, 3, 1))   # (COUT,KH,KW,CIN)
    w_t = w_t.reshape(COUT * KH * KW, CIN)
    w_sub = jnp.tile(w_t, (1, batch_block))[..., None]              # (27, BNC, 1)

    b = bias.astype(jnp.float32)

    kernel = functools.partial(_conv3x3_tanh_kernel, H=H, W=W, BN=batch_block)
    bnc = batch_block * CIN

    out_flat = pl.pallas_call(
        kernel,
        out_shape=jax.ShapeDtypeStruct((N, COUT, HW), jnp.float32),
        grid=(N // batch_block,),
        in_specs=[
            pl.BlockSpec((bnc, HW), lambda n: (n, 0)),
            pl.BlockSpec((COUT * KH * KW, bnc, 1), lambda n: (0, 0, 0)),
            pl.BlockSpec(memory_space=pltpu.MemorySpace.SMEM),
        ],
        out_specs=pl.BlockSpec((batch_block, COUT, HW), lambda n: (n, 0, 0)),
        scratch_shapes=[pltpu.VMEM((COUT, bnc, HW), jnp.float32)],
        compiler_params=pltpu.CompilerParams(
            dimension_semantics=("parallel",)),
    )(x_flat, w_sub, b)

    return out_flat.reshape(N, COUT, H, W)


def _reference(x, weight, bias):
    y = jax.lax.conv_general_dilated(
        x, weight, window_strides=(1, 1), padding="SAME",
        dimension_numbers=("NCHW", "OIHW", "NCHW"))
    return jnp.tanh(y + bias[None, :, None, None])


if __name__ == "__main__":
    key = jax.random.PRNGKey(0)
    kx, kw, kb = jax.random.split(key, 3)

    # Small shapes consistent with the module (Conv2d expects 3 input channels).
    N, H, W = 2, 16, 16
    x = jax.random.normal(kx, (N, CIN, H, W), dtype=jnp.float32)

    # Deterministic parameter init (PyTorch-style uniform(-k, k), k = 1/sqrt(fan_in)).
    fan_in = CIN * KH * KW
    bound = 1.0 / (fan_in ** 0.5)
    weight = jax.random.uniform(kw, (COUT, CIN, KH, KW), jnp.float32, -bound, bound)
    bias = jax.random.uniform(kb, (COUT,), jnp.float32, -bound, bound)

    out = dummy_cnn_forward(x, weight, bias)
    out = jax.block_until_ready(out)

    ref = _reference(x, weight, bias)
    assert out.shape == (N, COUT, H, W)
    assert jnp.allclose(out, ref, rtol=1e-5, atol=1e-5), "mismatch vs reference conv+tanh"

    print("KERNEL_OK")
</pallas_src>

<mosaic_0001>
module attributes {stable_mosaic.version = 11 : i64} {
  func.func @_conv3x3_tanh_kernel(%arg0: i32, %arg1: memref<6x256xf32, #tpu.memory_space<vmem>>, %arg2: memref<27x6x1xf32, #tpu.memory_space<vmem>>, %arg3: memref<3xf32, #tpu.memory_space<smem>>, %arg4: memref<2x3x256xf32, #tpu.memory_space<vmem>>, %arg5: memref<3x6x256xf32, #tpu.memory_space<vmem>>) attributes {dimension_semantics = [#tpu.dimension_semantics<parallel>], iteration_bounds = array<i64: 1>, scalar_prefetch = 0 : i64, scratch_operands = 1 : i64, tpu.core_type = #tpu.core_type<tc>, window_params = [{transform_indices = @transform_0, window_bounds = array<i64: 6, 256>}, {pipeline_mode = #tpu.pipeline_mode<synchronous>, transform_indices = @transform_1, window_bounds = array<i64: 27, 6, 1>}, {transform_indices = @transform_2, window_bounds = array<i64: 3>}, {transform_indices = @transform_3, window_bounds = array<i64: 2, 3, 256>}]} {
    %c0 = arith.constant 0 : index
    %c0_0 = arith.constant 0 : index
    %0 = vector.load %arg1[%c0, %c0_0] : memref<6x256xf32, #tpu.memory_space<vmem>>, vector<6x256xf32>
    %c0_1 = arith.constant 0 : index
    %c0_2 = arith.constant 0 : index
    %c0_3 = arith.constant 0 : index
    %1 = vector.load %arg2[%c0_1, %c0_2, %c0_3] : memref<27x6x1xf32, #tpu.memory_space<vmem>>, vector<1x6x1xf32>
    %2 = vector.shape_cast %1 : vector<1x6x1xf32> to vector<6x1xf32>
    %c1 = arith.constant 1 : index
    %c0_4 = arith.constant 0 : index
    %c0_5 = arith.constant 0 : index
    %3 = vector.load %arg2[%c1, %c0_4, %c0_5] : memref<27x6x1xf32, #tpu.memory_space<vmem>>, vector<1x6x1xf32>
    %4 = vector.shape_cast %3 : vector<1x6x1xf32> to vector<6x1xf32>
    %c2 = arith.constant 2 : index
    %c0_6 = arith.constant 0 : index
    %c0_7 = arith.constant 0 : index
    %5 = vector.load %arg2[%c2, %c0_6, %c0_7] : memref<27x6x1xf32, #tpu.memory_space<vmem>>, vector<1x6x1xf32>
    %6 = vector.shape_cast %5 : vector<1x6x1xf32> to vector<6x1xf32>
    %c3 = arith.constant 3 : index
    %c0_8 = arith.constant 0 : index
    %c0_9 = arith.constant 0 : index
    %7 = vector.load %arg2[%c3, %c0_8, %c0_9] : memref<27x6x1xf32, #tpu.memory_space<vmem>>, vector<1x6x1xf32>
    %8 = vector.shape_cast %7 : vector<1x6x1xf32> to vector<6x1xf32>
    %c4 = arith.constant 4 : index
    %c0_10 = arith.constant 0 : index
    %c0_11 = arith.constant 0 : index
    %9 = vector.load %arg2[%c4, %c0_10, %c0_11] : memref<27x6x1xf32, #tpu.memory_space<vmem>>, vector<1x6x1xf32>
    %10 = vector.shape_cast %9 : vector<1x6x1xf32> to vector<6x1xf32>
    %c5 = arith.constant 5 : index
    %c0_12 = arith.constant 0 : index
    %c0_13 = arith.constant 0 : index
    %11 = vector.load %arg2[%c5, %c0_12, %c0_13] : memref<27x6x1xf32, #tpu.memory_space<vmem>>, vector<1x6x1xf32>
    %12 = vector.shape_cast %11 : vector<1x6x1xf32> to vector<6x1xf32>
    %c6 = arith.constant 6 : index
    %c0_14 = arith.constant 0 : index
    %c0_15 = arith.constant 0 : index
    %13 = vector.load %arg2[%c6, %c0_14, %c0_15] : memref<27x6x1xf32, #tpu.memory_space<vmem>>, vector<1x6x1xf32>
    %14 = vector.shape_cast %13 : vector<1x6x1xf32> to vector<6x1xf32>
    %c7 = arith.constant 7 : index
    %c0_16 = arith.constant 0 : index
    %c0_17 = arith.constant 0 : index
    %15 = vector.load %arg2[%c7, %c0_16, %c0_17] : memref<27x6x1xf32, #tpu.memory_space<vmem>>, vector<1x6x1xf32>
    %16 = vector.shape_cast %15 : vector<1x6x1xf32> to vector<6x1xf32>
    %c8 = arith.constant 8 : index
    %c0_18 = arith.constant 0 : index
    %c0_19 = arith.constant 0 : index
    %17 = vector.load %arg2[%c8, %c0_18, %c0_19] : memref<27x6x1xf32, #tpu.memory_space<vmem>>, vector<1x6x1xf32>
    %18 = vector.shape_cast %17 : vector<1x6x1xf32> to vector<6x1xf32>
    %c9 = arith.constant 9 : index
    %c0_20 = arith.constant 0 : index
    %c0_21 = arith.constant 0 : index
    %19 = vector.load %arg2[%c9, %c0_20, %c0_21] : memref<27x6x1xf32, #tpu.memory_space<vmem>>, vector<1x6x1xf32>
    %20 = vector.shape_cast %19 : vector<1x6x1xf32> to vector<6x1xf32>
    %c10 = arith.constant 10 : index
    %c0_22 = arith.constant 0 : index
    %c0_23 = arith.constant 0 : index
    %21 = vector.load %arg2[%c10, %c0_22, %c0_23] : memref<27x6x1xf32, #tpu.memory_space<vmem>>, vector<1x6x1xf32>
    %22 = vector.shape_cast %21 : vector<1x6x1xf32> to vector<6x1xf32>
    %c11 = arith.constant 11 : index
    %c0_24 = arith.constant 0 : index
    %c0_25 = arith.constant 0 : index
    %23 = vector.load %arg2[%c11, %c0_24, %c0_25] : memref<27x6x1xf32, #tpu.memory_space<vmem>>, vector<1x6x1xf32>
    %24 = vector.shape_cast %23 : vector<1x6x1xf32> to vector<6x1xf32>
    %c12 = arith.constant 12 : index
    %c0_26 = arith.constant 0 : index
    %c0_27 = arith.constant 0 : index
    %25 = vector.load %arg2[%c12, %c0_26, %c0_27] : memref<27x6x1xf32, #tpu.memory_space<vmem>>, vector<1x6x1xf32>
    %26 = vector.shape_cast %25 : vector<1x6x1xf32> to vector<6x1xf32>
    %c13 = arith.constant 13 : index
    %c0_28 = arith.constant 0 : index
    %c0_29 = arith.constant 0 : index
    %27 = vector.load %arg2[%c13, %c0_28, %c0_29] : memref<27x6x1xf32, #tpu.memory_space<vmem>>, vector<1x6x1xf32>
    %28 = vector.shape_cast %27 : vector<1x6x1xf32> to vector<6x1xf32>
    %c14 = arith.constant 14 : index
    %c0_30 = arith.constant 0 : index
    %c0_31 = arith.constant 0 : index
    %29 = vector.load %arg2[%c14, %c0_30, %c0_31] : memref<27x6x1xf32, #tpu.memory_space<vmem>>, vector<1x6x1xf32>
    %30 = vector.shape_cast %29 : vector<1x6x1xf32> to vector<6x1xf32>
    %c15 = arith.constant 15 : index
    %c0_32 = arith.constant 0 : index
    %c0_33 = arith.constant 0 : index
    %31 = vector.load %arg2[%c15, %c0_32, %c0_33] : memref<27x6x1xf32, #tpu.memory_space<vmem>>, vector<1x6x1xf32>
    %32 = vector.shape_cast %31 : vector<1x6x1xf32> to vector<6x1xf32>
    %c16 = arith.constant 16 : index
    %c0_34 = arith.constant 0 : index
    %c0_35 = arith.constant 0 : index
    %33 = vector.load %arg2[%c16, %c0_34, %c0_35] : memref<27x6x1xf32, #tpu.memory_space<vmem>>, vector<1x6x1xf32>
    %34 = vector.shape_cast %33 : vector<1x6x1xf32> to vector<6x1xf32>
    %c17 = arith.constant 17 : index
    %c0_36 = arith.constant 0 : index
    %c0_37 = arith.constant 0 : index
    %35 = vector.load %arg2[%c17, %c0_36, %c0_37] : memref<27x6x1xf32, #tpu.memory_space<vmem>>, vector<1x6x1xf32>
    %36 = vector.shape_cast %35 : vector<1x6x1xf32> to vector<6x1xf32>
    %c18 = arith.constant 18 : index
    %c0_38 = arith.constant 0 : index
    %c0_39 = arith.constant 0 : index
    %37 = vector.load %arg2[%c18, %c0_38, %c0_39] : memref<27x6x1xf32, #tpu.memory_space<vmem>>, vector<1x6x1xf32>
    %38 = vector.shape_cast %37 : vector<1x6x1xf32> to vector<6x1xf32>
    %c19 = arith.constant 19 : index
    %c0_40 = arith.constant 0 : index
    %c0_41 = arith.constant 0 : index
    %39 = vector.load %arg2[%c19, %c0_40, %c0_41] : memref<27x6x1xf32, #tpu.memory_space<vmem>>, vector<1x6x1xf32>
    %40 = vector.shape_cast %39 : vector<1x6x1xf32> to vector<6x1xf32>
    %c20 = arith.constant 20 : index
    %c0_42 = arith.constant 0 : index
    %c0_43 = arith.constant 0 : index
    %41 = vector.load %arg2[%c20, %c0_42, %c0_43] : memref<27x6x1xf32, #tpu.memory_space<vmem>>, vector<1x6x1xf32>
    %42 = vector.shape_cast %41 : vector<1x6x1xf32> to vector<6x1xf32>
    %c21 = arith.constant 21 : index
    %c0_44 = arith.constant 0 : index
    %c0_45 = arith.constant 0 : index
    %43 = vector.load %arg2[%c21, %c0_44, %c0_45] : memref<27x6x1xf32, #tpu.memory_space<vmem>>, vector<1x6x1xf32>
    %44 = vector.shape_cast %43 : vector<1x6x1xf32> to vector<6x1xf32>
    %c22 = arith.constant 22 : index
    %c0_46 = arith.constant 0 : index
    %c0_47 = arith.constant 0 : index
    %45 = vector.load %arg2[%c22, %c0_46, %c0_47] : memref<27x6x1xf32, #tpu.memory_space<vmem>>, vector<1x6x1xf32>
    %46 = vector.shape_cast %45 : vector<1x6x1xf32> to vector<6x1xf32>
    %c23 = arith.constant 23 : index
    %c0_48 = arith.constant 0 : index
    %c0_49 = arith.constant 0 : index
    %47 = vector.load %arg2[%c23, %c0_48, %c0_49] : memref<27x6x1xf32, #tpu.memory_space<vmem>>, vector<1x6x1xf32>
    %48 = vector.shape_cast %47 : vector<1x6x1xf32> to vector<6x1xf32>
    %c24 = arith.constant 24 : index
    %c0_50 = arith.constant 0 : index
    %c0_51 = arith.constant 0 : index
    %49 = vector.load %arg2[%c24, %c0_50, %c0_51] : memref<27x6x1xf32, #tpu.memory_space<vmem>>, vector<1x6x1xf32>
    %50 = vector.shape_cast %49 : vector<1x6x1xf32> to vector<6x1xf32>
    %c25 = arith.constant 25 : index
    %c0_52 = arith.constant 0 : index
    %c0_53 = arith.constant 0 : index
    %51 = vector.load %arg2[%c25, %c0_52, %c0_53] : memref<27x6x1xf32, #tpu.memory_space<vmem>>, vector<1x6x1xf32>
    %52 = vector.shape_cast %51 : vector<1x6x1xf32> to vector<6x1xf32>
    %c26 = arith.constant 26 : index
    %c0_54 = arith.constant 0 : index
    %c0_55 = arith.constant 0 : index
    %53 = vector.load %arg2[%c26, %c0_54, %c0_55] : memref<27x6x1xf32, #tpu.memory_space<vmem>>, vector<1x6x1xf32>
    %54 = vector.shape_cast %53 : vector<1x6x1xf32> to vector<6x1xf32>
    %c0_56 = arith.constant 0 : index
    %55 = memref.load %arg3[%c0_56] : memref<3xf32, #tpu.memory_space<smem>>
    %c1_57 = arith.constant 1 : index
    %56 = memref.load %arg3[%c1_57] : memref<3xf32, #tpu.memory_space<smem>>
    %c2_58 = arith.constant 2 : index
    %57 = memref.load %arg3[%c2_58] : memref<3xf32, #tpu.memory_space<smem>>
    %58 = tpu.iota {dimensions = array<i32: 1>} : vector<6x256xi32>
    %c4_i32 = arith.constant 4 : i32
    %59 = vector.broadcast %c4_i32 : i32 to vector<6x256xi32>
    %60 = arith.shrsi %58, %59 : vector<6x256xi32>
    %c15_i32 = arith.constant 15 : i32
    %61 = vector.broadcast %c15_i32 : i32 to vector<6x256xi32>
    %62 = arith.andi %58, %61 : vector<6x256xi32>
    %c1_i32 = arith.constant 1 : i32
    %63 = vector.broadcast %c1_i32 : i32 to vector<6x256xi32>
    %64 = arith.cmpi sge, %60, %63 : vector<6x256xi32>
    %c15_i32_59 = arith.constant 15 : i32
    %65 = vector.broadcast %c15_i32_59 : i32 to vector<6x256xi32>
    %66 = arith.cmpi slt, %60, %65 : vector<6x256xi32>
    %c1_i32_60 = arith.constant 1 : i32
    %67 = vector.broadcast %c1_i32_60 : i32 to vector<6x256xi32>
    %68 = arith.cmpi sge, %62, %67 : vector<6x256xi32>
    %c15_i32_61 = arith.constant 15 : i32
    %69 = vector.broadcast %c15_i32_61 : i32 to vector<6x256xi32>
    %70 = arith.cmpi slt, %62, %69 : vector<6x256xi32>
    %cst = arith.constant 0.000000e+00 : f32
    %71 = vector.broadcast %cst : f32 to vector<6x256xf32>
    %cst_62 = arith.constant 0.000000e+00 : f32
    %72 = vector.broadcast %cst_62 : f32 to vector<6x256xf32>
    %cst_63 = arith.constant 0.000000e+00 : f32
    %73 = vector.broadcast %cst_63 : f32 to vector<6x256xf32>
    %c17_i32 = arith.constant 17 : i32
    %74 = tpu.dynamic_rotate %0 by %c17_i32 dim 1 : vector<6x256xf32>, i32 -> vector<6x256xf32>
    %75 = arith.andi %64, %68 : vector<6x256xi1>
    %cst_64 = arith.constant 0.000000e+00 : f32
    %76 = vector.broadcast %cst_64 : f32 to vector<6x256xf32>
    %77 = arith.select %75, %74, %76 : vector<6x256xi1>, vector<6x256xf32>
    %78 = vector.broadcast %2 : vector<6x1xf32> to vector<6x256xf32>
    %79 = arith.mulf %77, %78 : vector<6x256xf32>
    %80 = arith.addf %71, %79 : vector<6x256xf32>
    %81 = vector.broadcast %20 : vector<6x1xf32> to vector<6x256xf32>
    %82 = arith.mulf %77, %81 : vector<6x256xf32>
    %83 = arith.addf %72, %82 : vector<6x256xf32>
    %84 = vector.broadcast %38 : vector<6x1xf32> to vector<6x256xf32>
    %85 = arith.mulf %77, %84 : vector<6x256xf32>
    %86 = arith.addf %73, %85 : vector<6x256xf32>
    %c16_i32 = arith.constant 16 : i32
    %87 = tpu.dynamic_rotate %0 by %c16_i32 dim 1 : vector<6x256xf32>, i32 -> vector<6x256xf32>
    %cst_65 = arith.constant 0.000000e+00 : f32
    %88 = vector.broadcast %cst_65 : f32 to vector<6x256xf32>
    %89 = arith.select %64, %87, %88 : vector<6x256xi1>, vector<6x256xf32>
    %90 = vector.broadcast %4 : vector<6x1xf32> to vector<6x256xf32>
    %91 = arith.mulf %89, %90 : vector<6x256xf32>
    %92 = arith.addf %80, %91 : vector<6x256xf32>
    %93 = vector.broadcast %22 : vector<6x1xf32> to vector<6x256xf32>
    %94 = arith.mulf %89, %93 : vector<6x256xf32>
    %95 = arith.addf %83, %94 : vector<6x256xf32>
    %96 = vector.broadcast %40 : vector<6x1xf32> to vector<6x256xf32>
    %97 = arith.mulf %89, %96 : vector<6x256xf32>
    %98 = arith.addf %86, %97 : vector<6x256xf32>
    %c15_i32_66 = arith.constant 15 : i32
    %99 = tpu.dynamic_rotate %0 by %c15_i32_66 dim 1 : vector<6x256xf32>, i32 -> vector<6x256xf32>
    %100 = arith.andi %64, %70 : vector<6x256xi1>
    %cst_67 = arith.constant 0.000000e+00 : f32
    %101 = vector.broadcast %cst_67 : f32 to vector<6x256xf32>
    %102 = arith.select %100, %99, %101 : vector<6x256xi1>, vector<6x256xf32>
    %103 = vector.broadcast %6 : vector<6x1xf32> to vector<6x256xf32>
    %104 = arith.mulf %102, %103 : vector<6x256xf32>
    %105 = arith.addf %92, %104 : vector<6x256xf32>
    %106 = vector.broadcast %24 : vector<6x1xf32> to vector<6x256xf32>
    %107 = arith.mulf %102, %106 : vector<6x256xf32>
    %108 = arith.addf %95, %107 : vector<6x256xf32>
    %109 = vector.broadcast %42 : vector<6x1xf32> to vector<6x256xf32>
    %110 = arith.mulf %102, %109 : vector<6x256xf32>
    %111 = arith.addf %98, %110 : vector<6x256xf32>
    %c1_i32_68 = arith.constant 1 : i32
    %112 = tpu.dynamic_rotate %0 by %c1_i32_68 dim 1 : vector<6x256xf32>, i32 -> vector<6x256xf32>
    %cst_69 = arith.constant 0.000000e+00 : f32
    %113 = vector.broadcast %cst_69 : f32 to vector<6x256xf32>
    %114 = arith.select %68, %112, %113 : vector<6x256xi1>, vector<6x256xf32>
    %115 = vector.broadcast %8 : vector<6x1xf32> to vector<6x256xf32>
    %116 = arith.mulf %114, %115 : vector<6x256xf32>
    %117 = arith.addf %105, %116 : vector<6x256xf32>
    %118 = vector.broadcast %26 : vector<6x1xf32> to vector<6x256xf32>
    %119 = arith.mulf %114, %118 : vector<6x256xf32>
    %120 = arith.addf %108, %119 : vector<6x256xf32>
    %121 = vector.broadcast %44 : vector<6x1xf32> to vector<6x256xf32>
    %122 = arith.mulf %114, %121 : vector<6x256xf32>
    %123 = arith.addf %111, %122 : vector<6x256xf32>
    %124 = vector.broadcast %10 : vector<6x1xf32> to vector<6x256xf32>
    %125 = arith.mulf %0, %124 : vector<6x256xf32>
    %126 = arith.addf %117, %125 : vector<6x256xf32>
    %127 = vector.broadcast %28 : vector<6x1xf32> to vector<6x256xf32>
    %128 = arith.mulf %0, %127 : vector<6x256xf32>
    %129 = arith.addf %120, %128 : vector<6x256xf32>
    %130 = vector.broadcast %46 : vector<6x1xf32> to vector<6x256xf32>
    %131 = arith.mulf %0, %130 : vector<6x256xf32>
    %132 = arith.addf %123, %131 : vector<6x256xf32>
    %c255_i32 = arith.constant 255 : i32
    %133 = tpu.dynamic_rotate %0 by %c255_i32 dim 1 : vector<6x256xf32>, i32 -> vector<6x256xf32>
    %cst_70 = arith.constant 0.000000e+00 : f32
    %134 = vector.broadcast %cst_70 : f32 to vector<6x256xf32>
    %135 = arith.select %70, %133, %134 : vector<6x256xi1>, vector<6x256xf32>
    %136 = vector.broadcast %12 : vector<6x1xf32> to vector<6x256xf32>
    %137 = arith.mulf %135, %136 : vector<6x256xf32>
    %138 = arith.addf %126, %137 : vector<6x256xf32>
    %139 = vector.broadcast %30 : vector<6x1xf32> to vector<6x256xf32>
    %140 = arith.mulf %135, %139 : vector<6x256xf32>
    %141 = arith.addf %129, %140 : vector<6x256xf32>
    %142 = vector.broadcast %48 : vector<6x1xf32> to vector<6x256xf32>
    %143 = arith.mulf %135, %142 : vector<6x256xf32>
    %144 = arith.addf %132, %143 : vector<6x256xf32>
    %c241_i32 = arith.constant 241 : i32
    %145 = tpu.dynamic_rotate %0 by %c241_i32 dim 1 : vector<6x256xf32>, i32 -> vector<6x256xf32>
    %146 = arith.andi %66, %68 : vector<6x256xi1>
    %cst_71 = arith.constant 0.000000e+00 : f32
    %147 = vector.broadcast %cst_71 : f32 to vector<6x256xf32>
    %148 = arith.select %146, %145, %147 : vector<6x256xi1>, vector<6x256xf32>
    %149 = vector.broadcast %14 : vector<6x1xf32> to vector<6x256xf32>
    %150 = arith.mulf %148, %149 : vector<6x256xf32>
    %151 = arith.addf %138, %150 : vector<6x256xf32>
    %152 = vector.broadcast %32 : vector<6x1xf32> to vector<6x256xf32>
    %153 = arith.mulf %148, %152 : vector<6x256xf32>
    %154 = arith.addf %141, %153 : vector<6x256xf32>
    %155 = vector.broadcast %50 : vector<6x1xf32> to vector<6x256xf32>
    %156 = arith.mulf %148, %155 : vector<6x256xf32>
    %157 = arith.addf %144, %156 : vector<6x256xf32>
    %c240_i32 = arith.constant 240 : i32
    %158 = tpu.dynamic_rotate %0 by %c240_i32 dim 1 : vector<6x256xf32>, i32 -> vector<6x256xf32>
    %cst_72 = arith.constant 0.000000e+00 : f32
    %159 = vector.broadcast %cst_72 : f32 to vector<6x256xf32>
    %160 = arith.select %66, %158, %159 : vector<6x256xi1>, vector<6x256xf32>
    %161 = vector.broadcast %16 : vector<6x1xf32> to vector<6x256xf32>
    %162 = arith.mulf %160, %161 : vector<6x256xf32>
    %163 = arith.addf %151, %162 : vector<6x256xf32>
    %164 = vector.broadcast %34 : vector<6x1xf32> to vector<6x256xf32>
    %165 = arith.mulf %160, %164 : vector<6x256xf32>
    %166 = arith.addf %154, %165 : vector<6x256xf32>
    %167 = vector.broadcast %52 : vector<6x1xf32> to vector<6x256xf32>
    %168 = arith.mulf %160, %167 : vector<6x256xf32>
    %169 = arith.addf %157, %168 : vector<6x256xf32>
    %c239_i32 = arith.constant 239 : i32
    %170 = tpu.dynamic_rotate %0 by %c239_i32 dim 1 : vector<6x256xf32>, i32 -> vector<6x256xf32>
    %171 = arith.andi %66, %70 : vector<6x256xi1>
    %cst_73 = arith.constant 0.000000e+00 : f32
    %172 = vector.broadcast %cst_73 : f32 to vector<6x256xf32>
    %173 = arith.select %171, %170, %172 : vector<6x256xi1>, vector<6x256xf32>
    %174 = vector.broadcast %18 : vector<6x1xf32> to vector<6x256xf32>
    %175 = arith.mulf %173, %174 : vector<6x256xf32>
    %176 = arith.addf %163, %175 : vector<6x256xf32>
    %177 = vector.broadcast %36 : vector<6x1xf32> to vector<6x256xf32>
    %178 = arith.mulf %173, %177 : vector<6x256xf32>
    %179 = arith.addf %166, %178 : vector<6x256xf32>
    %180 = vector.broadcast %54 : vector<6x1xf32> to vector<6x256xf32>
    %181 = arith.mulf %173, %180 : vector<6x256xf32>
    %182 = arith.addf %169, %181 : vector<6x256xf32>
    %c0_74 = arith.constant 0 : index
    %c0_75 = arith.constant 0 : index
    %c0_76 = arith.constant 0 : index
    %183 = vector.load %arg5[%c0_74, %c0_75, %c0_76] : memref<3x6x256xf32, #tpu.memory_space<vmem>>, vector<1x6x256xf32>
    %184 = vector.shape_cast %183 : vector<1x6x256xf32> to vector<6x256xf32>
    %185 = vector.shape_cast %176 : vector<6x256xf32> to vector<1x6x256xf32>
    tpu.vector_store %arg5[%c0_74, %c0_75, %c0_76], %185 {strides = array<i32>} : memref<3x6x256xf32, #tpu.memory_space<vmem>>, vector<1x6x256xf32>,
    %c1_77 = arith.constant 1 : index
    %c0_78 = arith.constant 0 : index
    %c0_79 = arith.constant 0 : index
    %186 = vector.load %arg5[%c1_77, %c0_78, %c0_79] : memref<3x6x256xf32, #tpu.memory_space<vmem>>, vector<1x6x256xf32>
    %187 = vector.shape_cast %186 : vector<1x6x256xf32> to vector<6x256xf32>
    %188 = vector.shape_cast %179 : vector<6x256xf32> to vector<1x6x256xf32>
    tpu.vector_store %arg5[%c1_77, %c0_78, %c0_79], %188 {strides = array<i32>} : memref<3x6x256xf32, #tpu.memory_space<vmem>>, vector<1x6x256xf32>,
    %c2_80 = arith.constant 2 : index
    %c0_81 = arith.constant 0 : index
    %c0_82 = arith.constant 0 : index
    %189 = vector.load %arg5[%c2_80, %c0_81, %c0_82] : memref<3x6x256xf32, #tpu.memory_space<vmem>>, vector<1x6x256xf32>
    %190 = vector.shape_cast %189 : vector<1x6x256xf32> to vector<6x256xf32>
    %191 = vector.shape_cast %182 : vector<6x256xf32> to vector<1x6x256xf32>
    tpu.vector_store %arg5[%c2_80, %c0_81, %c0_82], %191 {strides = array<i32>} : memref<3x6x256xf32, #tpu.memory_space<vmem>>, vector<1x6x256xf32>,
    %c0_83 = arith.constant 0 : index
    %c0_84 = arith.constant 0 : index
    %c0_85 = arith.constant 0 : index
    %192 = vector.load %arg5[%c0_83, %c0_84, %c0_85] : memref<3x6x256xf32, #tpu.memory_space<vmem>>, vector<1x1x256xf32>
    %193 = vector.shape_cast %192 : vector<1x1x256xf32> to vector<256xf32>
    %c0_86 = arith.constant 0 : index
    %c1_87 = arith.constant 1 : index
    %c0_88 = arith.constant 0 : index
    %194 = vector.load %arg5[%c0_86, %c1_87, %c0_88] : memref<3x6x256xf32, #tpu.memory_space<vmem>>, vector<1x1x256xf32>
    %195 = vector.shape_cast %194 : vector<1x1x256xf32> to vector<256xf32>
    %196 = arith.addf %193, %195 : vector<256xf32>
    %c0_89 = arith.constant 0 : index
    %c2_90 = arith.constant 2 : index
    %c0_91 = arith.constant 0 : index
    %197 = vector.load %arg5[%c0_89, %c2_90, %c0_91] : memref<3x6x256xf32, #tpu.memory_space<vmem>>, vector<1x1x256xf32>
    %198 = vector.shape_cast %197 : vector<1x1x256xf32> to vector<256xf32>
    %199 = arith.addf %196, %198 : vector<256xf32>
    %200 = vector.broadcast %55 : f32 to vector<256xf32>
    %201 = arith.addf %199, %200 : vector<256xf32>
    %202 = math.tanh %201 : vector<256xf32>
    %c0_92 = arith.constant 0 : index
    %c0_93 = arith.constant 0 : index
    %c0_94 = arith.constant 0 : index
    %203 = vector.load %arg4[%c0_92, %c0_93, %c0_94] : memref<2x3x256xf32, #tpu.memory_space<vmem>>, vector<1x1x256xf32>
    %204 = vector.shape_cast %203 : vector<1x1x256xf32> to vector<256xf32>
    %205 = vector.shape_cast %202 : vector<256xf32> to vector<1x1x256xf32>
    tpu.vector_store %arg4[%c0_92, %c0_93, %c0_94], %205 {strides = array<i32>} : memref<2x3x256xf32, #tpu.memory_space<vmem>>, vector<1x1x256xf32>,
    %c1_95 = arith.constant 1 : index
    %c0_96 = arith.constant 0 : index
    %c0_97 = arith.constant 0 : index
    %206 = vector.load %arg5[%c1_95, %c0_96, %c0_97] : memref<3x6x256xf32, #tpu.memory_space<vmem>>, vector<1x1x256xf32>
    %207 = vector.shape_cast %206 : vector<1x1x256xf32> to vector<256xf32>
    %c1_98 = arith.constant 1 : index
    %c1_99 = arith.constant 1 : index
    %c0_100 = arith.constant 0 : index
    %208 = vector.load %arg5[%c1_98, %c1_99, %c0_100] : memref<3x6x256xf32, #tpu.memory_space<vmem>>, vector<1x1x256xf32>
    %209 = vector.shape_cast %208 : vector<1x1x256xf32> to vector<256xf32>
    %210 = arith.addf %207, %209 : vector<256xf32>
    %c1_101 = arith.constant 1 : index
    %c2_102 = arith.constant 2 : index
    %c0_103 = arith.constant 0 : index
    %211 = vector.load %arg5[%c1_101, %c2_102, %c0_103] : memref<3x6x256xf32, #tpu.memory_space<vmem>>, vector<1x1x256xf32>
    %212 = vector.shape_cast %211 : vector<1x1x256xf32> to vector<256xf32>
    %213 = arith.addf %210, %212 : vector<256xf32>
    %214 = vector.broadcast %56 : f32 to vector<256xf32>
    %215 = arith.addf %213, %214 : vector<256xf32>
    %216 = math.tanh %215 : vector<256xf32>
    %c0_104 = arith.constant 0 : index
    %c1_105 = arith.constant 1 : index
    %c0_106 = arith.constant 0 : index
    %217 = vector.load %arg4[%c0_104, %c1_105, %c0_106] : memref<2x3x256xf32, #tpu.memory_space<vmem>>, vector<1x1x256xf32>
    %218 = vector.shape_cast %217 : vector<1x1x256xf32> to vector<256xf32>
    %219 = vector.shape_cast %216 : vector<256xf32> to vector<1x1x256xf32>
    tpu.vector_store %arg4[%c0_104, %c1_105, %c0_106], %219 {strides = array<i32>} : memref<2x3x256xf32, #tpu.memory_space<vmem>>, vector<1x1x256xf32>,
    %c2_107 = arith.constant 2 : index
    %c0_108 = arith.constant 0 : index
    %c0_109 = arith.constant 0 : index
    %220 = vector.load %arg5[%c2_107, %c0_108, %c0_109] : memref<3x6x256xf32, #tpu.memory_space<vmem>>, vector<1x1x256xf32>
    %221 = vector.shape_cast %220 : vector<1x1x256xf32> to vector<256xf32>
    %c2_110 = arith.constant 2 : index
    %c1_111 = arith.constant 1 : index
    %c0_112 = arith.constant 0 : index
    %222 = vector.load %arg5[%c2_110, %c1_111, %c0_112] : memref<3x6x256xf32, #tpu.memory_space<vmem>>, vector<1x1x256xf32>
    %223 = vector.shape_cast %222 : vector<1x1x256xf32> to vector<256xf32>
    %224 = arith.addf %221, %223 : vector<256xf32>
    %c2_113 = arith.constant 2 : index
    %c2_114 = arith.constant 2 : index
    %c0_115 = arith.constant 0 : index
    %225 = vector.load %arg5[%c2_113, %c2_114, %c0_115] : memref<3x6x256xf32, #tpu.memory_space<vmem>>, vector<1x1x256xf32>
    %226 = vector.shape_cast %225 : vector<1x1x256xf32> to vector<256xf32>
    %227 = arith.addf %224, %226 : vector<256xf32>
    %228 = vector.broadcast %57 : f32 to vector<256xf32>
    %229 = arith.addf %227, %228 : vector<256xf32>
    %230 = math.tanh %229 : vector<256xf32>
    %c0_116 = arith.constant 0 : index
    %c2_117 = arith.constant 2 : index
    %c0_118 = arith.constant 0 : index
    %231 = vector.load %arg4[%c0_116, %c2_117, %c0_118] : memref<2x3x256xf32, #tpu.memory_space<vmem>>, vector<1x1x256xf32>
    %232 = vector.shape_cast %231 : vector<1x1x256xf32> to vector<256xf32>
    %233 = vector.shape_cast %230 : vector<256xf32> to vector<1x1x256xf32>
    tpu.vector_store %arg4[%c0_116, %c2_117, %c0_118], %233 {strides = array<i32>} : memref<2x3x256xf32, #tpu.memory_space<vmem>>, vector<1x1x256xf32>,
    %c0_119 = arith.constant 0 : index
    %c3_120 = arith.constant 3 : index
    %c0_121 = arith.constant 0 : index
    %234 = vector.load %arg5[%c0_119, %c3_120, %c0_121] : memref<3x6x256xf32, #tpu.memory_space<vmem>>, vector<1x1x256xf32>
    %235 = vector.shape_cast %234 : vector<1x1x256xf32> to vector<256xf32>
    %c0_122 = arith.constant 0 : index
    %c4_123 = arith.constant 4 : index
    %c0_124 = arith.constant 0 : index
    %236 = vector.load %arg5[%c0_122, %c4_123, %c0_124] : memref<3x6x256xf32, #tpu.memory_space<vmem>>, vector<1x1x256xf32>
    %237 = vector.shape_cast %236 : vector<1x1x256xf32> to vector<256xf32>
    %238 = arith.addf %235, %237 : vector<256xf32>
    %c0_125 = arith.constant 0 : index
    %c5_126 = arith.constant 5 : index
    %c0_127 = arith.constant 0 : index
    %239 = vector.load %arg5[%c0_125, %c5_126, %c0_127] : memref<3x6x256xf32, #tpu.memory_space<vmem>>, vector<1x1x256xf32>
    %240 = vector.shape_cast %239 : vector<1x1x256xf32> to vector<256xf32>
    %241 = arith.addf %238, %240 : vector<256xf32>
    %242 = vector.broadcast %55 : f32 to vector<256xf32>
    %243 = arith.addf %241, %242 : vector<256xf32>
    %244 = math.tanh %243 : vector<256xf32>
    %c1_128 = arith.constant 1 : index
    %c0_129 = arith.constant 0 : index
    %c0_130 = arith.constant 0 : index
    %245 = vector.load %arg4[%c1_128, %c0_129, %c0_130] : memref<2x3x256xf32, #tpu.memory_space<vmem>>, vector<1x1x256xf32>
    %246 = vector.shape_cast %245 : vector<1x1x256xf32> to vector<256xf32>
    %247 = vector.shape_cast %244 : vector<256xf32> to vector<1x1x256xf32>
    tpu.vector_store %arg4[%c1_128, %c0_129, %c0_130], %247 {strides = array<i32>} : memref<2x3x256xf32, #tpu.memory_space<vmem>>, vector<1x1x256xf32>,
    %c1_131 = arith.constant 1 : index
    %c3_132 = arith.constant 3 : index
    %c0_133 = arith.constant 0 : index
    %248 = vector.load %arg5[%c1_131, %c3_132, %c0_133] : memref<3x6x256xf32, #tpu.memory_space<vmem>>, vector<1x1x256xf32>
    %249 = vector.shape_cast %248 : vector<1x1x256xf32> to vector<256xf32>
    %c1_134 = arith.constant 1 : index
    %c4_135 = arith.constant 4 : index
    %c0_136 = arith.constant 0 : index
    %250 = vector.load %arg5[%c1_134, %c4_135, %c0_136] : memref<3x6x256xf32, #tpu.memory_space<vmem>>, vector<1x1x256xf32>
    %251 = vector.shape_cast %250 : vector<1x1x256xf32> to vector<256xf32>
    %252 = arith.addf %249, %251 : vector<256xf32>
    %c1_137 = arith.constant 1 : index
    %c5_138 = arith.constant 5 : index
    %c0_139 = arith.constant 0 : index
    %253 = vector.load %arg5[%c1_137, %c5_138, %c0_139] : memref<3x6x256xf32, #tpu.memory_space<vmem>>, vector<1x1x256xf32>
    %254 = vector.shape_cast %253 : vector<1x1x256xf32> to vector<256xf32>
    %255 = arith.addf %252, %254 : vector<256xf32>
    %256 = vector.broadcast %56 : f32 to vector<256xf32>
    %257 = arith.addf %255, %256 : vector<256xf32>
    %258 = math.tanh %257 : vector<256xf32>
    %c1_140 = arith.constant 1 : index
    %c1_141 = arith.constant 1 : index
    %c0_142 = arith.constant 0 : index
    %259 = vector.load %arg4[%c1_140, %c1_141, %c0_142] : memref<2x3x256xf32, #tpu.memory_space<vmem>>, vector<1x1x256xf32>
    %260 = vector.shape_cast %259 : vector<1x1x256xf32> to vector<256xf32>
    %261 = vector.shape_cast %258 : vector<256xf32> to vector<1x1x256xf32>
    tpu.vector_store %arg4[%c1_140, %c1_141, %c0_142], %261 {strides = array<i32>} : memref<2x3x256xf32, #tpu.memory_space<vmem>>, vector<1x1x256xf32>,
    %c2_143 = arith.constant 2 : index
    %c3_144 = arith.constant 3 : index
    %c0_145 = arith.constant 0 : index
    %262 = vector.load %arg5[%c2_143, %c3_144, %c0_145] : memref<3x6x256xf32, #tpu.memory_space<vmem>>, vector<1x1x256xf32>
    %263 = vector.shape_cast %262 : vector<1x1x256xf32> to vector<256xf32>
    %c2_146 = arith.constant 2 : index
    %c4_147 = arith.constant 4 : index
    %c0_148 = arith.constant 0 : index
    %264 = vector.load %arg5[%c2_146, %c4_147, %c0_148] : memref<3x6x256xf32, #tpu.memory_space<vmem>>, vector<1x1x256xf32>
    %265 = vector.shape_cast %264 : vector<1x1x256xf32> to vector<256xf32>
    %266 = arith.addf %263, %265 : vector<256xf32>
    %c2_149 = arith.constant 2 : index
    %c5_150 = arith.constant 5 : index
    %c0_151 = arith.constant 0 : index
    %267 = vector.load %arg5[%c2_149, %c5_150, %c0_151] : memref<3x6x256xf32, #tpu.memory_space<vmem>>, vector<1x1x256xf32>
    %268 = vector.shape_cast %267 : vector<1x1x256xf32> to vector<256xf32>
    %269 = arith.addf %266, %268 : vector<256xf32>
    %270 = vector.broadcast %57 : f32 to vector<256xf32>
    %271 = arith.addf %269, %270 : vector<256xf32>
    %272 = math.tanh %271 : vector<256xf32>
    %c1_152 = arith.constant 1 : index
    %c2_153 = arith.constant 2 : index
    %c0_154 = arith.constant 0 : index
    %273 = vector.load %arg4[%c1_152, %c2_153, %c0_154] : memref<2x3x256xf32, #tpu.memory_space<vmem>>, vector<1x1x256xf32>
    %274 = vector.shape_cast %273 : vector<1x1x256xf32> to vector<256xf32>
    %275 = vector.shape_cast %272 : vector<256xf32> to vector<1x1x256xf32>
    tpu.vector_store %arg4[%c1_152, %c2_153, %c0_154], %275 {strides = array<i32>} : memref<2x3x256xf32, #tpu.memory_space<vmem>>, vector<1x1x256xf32>,
    return
  }
  func.func @transform_0(%arg0: i32) -> (i32, i32) {
    %c0_i32 = arith.constant 0 : i32
    %c0_i32_0 = arith.constant 0 : i32
    return %arg0, %c0_i32 : i32, i32
  }
  func.func @transform_1(%arg0: i32) -> (i32, i32, i32) {
    %c0_i32 = arith.constant 0 : i32
    %c0_i32_0 = arith.constant 0 : i32
    %c0_i32_1 = arith.constant 0 : i32
    %c0_i32_2 = arith.constant 0 : i32
    return %c0_i32, %c0_i32_0, %c0_i32_1 : i32, i32, i32
  }
  func.func @transform_2(%arg0: i32) -> i32 {
    %c0_i32 = arith.constant 0 : i32
    %c0_i32_0 = arith.constant 0 : i32
    return %c0_i32 : i32
  }
  func.func @transform_3(%arg0: i32) -> (i32, i32, i32) {
    %c0_i32 = arith.constant 0 : i32
    %c0_i32_0 = arith.constant 0 : i32
    %c0_i32_1 = arith.constant 0 : i32
    return %arg0, %c0_i32, %c0_i32_0 : i32, i32, i32
  }
}

</mosaic_0001>

<llo_original>
// kernel: tpu_custom_call.1
$region0: #{tpu_custom_call.1}
  #allocation0 [shape = 'u32[]', space=smem, size = 0x4, offset = 0x4, fixed_abs, tag = 'smem constant byte address 0x4 - core index']
  #allocation1 [shape = 'u32[144,128]{1,0:T(1,128)}', space=vmem, size = 0x12000, scoped, tag = 'internal scratch']
  #allocation2 [shape = 'f32[3,6,256]{2,1,0:T(8,128)}', space=vmem, size = 0x6000, scoped, tag = 'scratch operand']
  %s0 = inlined_call_operand.vmem [shape: f32[6,256], index: 0, kind: input, shape index: {}]
  %s1 = inlined_call_operand.vmem [shape: f32[27,6,1], index: 1, kind: input, shape index: {}]
  %s2 = inlined_call_operand.vmem [shape: f32[3], index: 2, kind: input, shape index: {}]
  %s3 = inlined_call_operand.vmem [shape: f32[2,3,256], index: 3, kind: output, shape index: {}]
  %s4 = sld [smem:[#allocation0]]
  $region26: #{tpu_custom_call.1} parent=0
    _
  %s6 = ssub.s32 1, %s4
  %s7 = scalar_select 0, %s6, %s4
  $region1: #{tpu_custom_call.1} parent=0
    #allocation3 [shape = 'u8[512]{0}', space=smem, size = 0x200, scoped, tag = 'input window, operand 2, single buffered']
    #allocation4 [shape = 's32[1]{0}', space=sflag, size = 0x4, scoped, tag = 'scoped memory for tpu_custom_call.1']
    %8 = vsyncpa [#allocation4], 0
    // Predicated region
    $region2: #{tpu_custom_call.1} parent=1 // pred_check
      _
    $region3: #{tpu_custom_call.1} parent=1 // pred_check_branch
      %10 = sbr.rel (0) target = $region5
    $region4: #{tpu_custom_call.1} parent=1 // pred_region
      _
    $region5: #{tpu_custom_call.1} parent=1 // pred_fallthru
      _
    // Predicated region
    $region6: #{tpu_custom_call.1} parent=1 // pred_check
      _
    $region7: #{tpu_custom_call.1} parent=1 // pred_check_branch
      %12 = sbr.rel (0) target = $region9
    $region8: #{tpu_custom_call.1} parent=1 // pred_region
      _
    $region9: #{tpu_custom_call.1} parent=1 // pred_fallthru
      _
    // Predicated region
    $region10: #{tpu_custom_call.1} parent=1 // pred_check
      _
    $region11: #{tpu_custom_call.1} parent=1 // pred_check_branch
      %14 = sbr.rel (0) target = $region13
    $region12: #{tpu_custom_call.1} parent=1 // pred_region
      %s16 = ssub.s32 16, 16
      %17 = vsyncadd [#allocation4], %s16
      %s19 = sshll.u32 %s2, 4
      %s20 = int_to_ptr.vmem [resolvable:$true] %s19
      %22 = dma.vmem_to_smem %s20, 16, [#allocation3], [#allocation4]
    $region13: #{tpu_custom_call.1} parent=1 // pred_fallthru
      _
    // Predicated region
    $region14: #{tpu_custom_call.1} parent=1 // pred_check
      _
    $region15: #{tpu_custom_call.1} parent=1 // pred_check_branch
      %24 = sbr.rel (0) target = $region17
    $region16: #{tpu_custom_call.1} parent=1 // pred_region
      %25 = dma.done [#allocation4], 16
    $region17: #{tpu_custom_call.1} parent=1 // pred_fallthru
      _
    %26 = sfence
    %v27 = vld [vmem:[%s0] sm:$0x3f]
    %v28 = vld [vmem:[%s0 + $0x8] sm:$0x3f]
    %v29 = vld [vmem:[%s1] sm:$0x3f]
    %s30 = scalar_lea.vmem %s1, 8
    %v31 = vld [vmem:[%s30] sm:$0x3f]
    %s32 = scalar_lea.vmem %s1, 16
    %v33 = vld [vmem:[%s32] sm:$0x3f]
    %s34 = scalar_lea.vmem %s1, 24
    %v35 = vld [vmem:[%s34] sm:$0x3f]
    %s36 = scalar_lea.vmem %s1, 32
    %v37 = vld [vmem:[%s36] sm:$0x3f]
    %s38 = scalar_lea.vmem %s1, 40
    %v39 = vld [vmem:[%s38] sm:$0x3f]
    %s40 = scalar_lea.vmem %s1, 48
    %v41 = vld [vmem:[%s40] sm:$0x3f]
    %s42 = scalar_lea.vmem %s1, 56
    %v43 = vld [vmem:[%s42] sm:$0x3f]
    %s44 = scalar_lea.vmem %s1, 64
    %v45 = vld [vmem:[%s44] sm:$0x3f]
    %s46 = scalar_lea.vmem %s1, 72
    %v47 = vld [vmem:[%s46] sm:$0x3f]
    %s48 = scalar_lea.vmem %s1, 80
    %v49 = vld [vmem:[%s48] sm:$0x3f]
    %s50 = scalar_lea.vmem %s1, 88
    %v51 = vld [vmem:[%s50] sm:$0x3f]
    %s52 = scalar_lea.vmem %s1, 96
    %v53 = vld [vmem:[%s52] sm:$0x3f]
    %s54 = scalar_lea.vmem %s1, 104
    %v55 = vld [vmem:[%s54] sm:$0x3f]
    %s56 = scalar_lea.vmem %s1, 112
    %v57 = vld [vmem:[%s56] sm:$0x3f]
    %s58 = scalar_lea.vmem %s1, 120
    %v59 = vld [vmem:[%s58] sm:$0x3f]
    %s60 = scalar_lea.vmem %s1, 128
    %v61 = vld [vmem:[%s60] sm:$0x3f]
    %s62 = scalar_lea.vmem %s1, 136
    %v63 = vld [vmem:[%s62] sm:$0x3f]
    %s64 = scalar_lea.vmem %s1, 144
    %v65 = vld [vmem:[%s64] sm:$0x3f]
    %s66 = scalar_lea.vmem %s1, 152
    %v67 = vld [vmem:[%s66] sm:$0x3f]
    %s68 = scalar_lea.vmem %s1, 160
    %v69 = vld [vmem:[%s68] sm:$0x3f]
    %s70 = scalar_lea.vmem %s1, 168
    %v71 = vld [vmem:[%s70] sm:$0x3f]
    %s72 = scalar_lea.vmem %s1, 176
    %v73 = vld [vmem:[%s72] sm:$0x3f]
    %s74 = scalar_lea.vmem %s1, 184
    %v75 = vld [vmem:[%s74] sm:$0x3f]
    %s76 = scalar_lea.vmem %s1, 192
    %v77 = vld [vmem:[%s76] sm:$0x3f]
    %s78 = scalar_lea.vmem %s1, 200
    %v79 = vld [vmem:[%s78] sm:$0x3f]
    %s80 = scalar_lea.vmem %s1, 208
    %v81 = vld [vmem:[%s80] sm:$0x3f]
    %s82 = sld [smem:[#allocation3]]
    %s83 = sld [smem:[#allocation3 + $0x1]]
    %s84 = sld [smem:[#allocation3 + $0x2]]
    %v85 = vlaneseq
    %v86 = vand.u32 %v85, 127
    %v87 = vadd.s32 %v86, 128
    %v88 = vshra.s32 %v86, 4
    %v89 = vshra.s32 %v87, 4
    %v90 = vand.u32 %v86, 15
    %v91 = vand.u32 %v87, 15
    %vm92 = vcmp.ge.s32.totalorder %v88, 1
    %vm93 = vcmp.ge.s32.totalorder %v89, 1
    %vm94 = vcmp.lt.s32.totalorder %v88, 15
    %vm95 = vcmp.lt.s32.totalorder %v89, 15
    %vm96 = vcmp.ge.s32.totalorder %v90, 1
    %vm97 = vcmp.ge.s32.totalorder %v91, 1
    %vm98 = vcmp.lt.s32.totalorder %v90, 15
    %vm99 = vcmp.lt.s32.totalorder %v91, 15
    %100 = vrot.lane.b32.xlu0 %v27, 17
    %v101 = vpop.permute.xlu0 %100
    %102 = vrot.lane.b32.xlu0 %v28, 17
    %v103 = vpop.permute.xlu0 %102
    %vm104 = vcmp.lt.s32.totalorder %v86, 17
    %v105 = vsel %vm104, %v101, %v103
    %v106 = vsel %vm104, %v103, %v101
    %vm107 = vmand %vm92, %vm96
    %vm108 = vmand %vm93, %vm97
    %v109 = vsel %vm107, %v106, 0.0
    %v110 = vsel %vm108, %v105, 0.0
    %112 = vset.pattern.permute.xlu0 0
    %113 = vperm.xlu0 %112, %v29
    %v114 = vpop.permute.xlu0 %113
    %v116 = vmul.f32 %v109, %v114
    %v117 = vmul.f32 %v110, %v114
    %v118 = vadd.f32 %v116, 0.0
    %v119 = vadd.f32 %v117, 0.0
    %121 = vset.pattern.permute.xlu0 0
    %122 = vperm.xlu0 %121, %v47
    %v123 = vpop.permute.xlu0 %122
    %v125 = vmul.f32 %v109, %v123
    %v126 = vmul.f32 %v110, %v123
    %v127 = vadd.f32 %v125, 0.0
    %v128 = vadd.f32 %v126, 0.0
    %130 = vset.pattern.permute.xlu0 0
    %131 = vperm.xlu0 %130, %v65
    %v132 = vpop.permute.xlu0 %131
    %v134 = vmul.f32 %v109, %v132
    %v135 = vmul.f32 %v110, %v132
    %v136 = vadd.f32 %v134, 0.0
    %v137 = vadd.f32 %v135, 0.0
    %138 = vrot.lane.b32.xlu0 %v27, 16
    %v139 = vpop.permute.xlu0 %138
    %140 = vrot.lane.b32.xlu0 %v28, 16
    %v141 = vpop.permute.xlu0 %140
    %vm142 = vcmp.lt.s32.totalorder %v86, 16
    %v143 = vsel %vm142, %v139, %v141
    %v144 = vsel %vm142, %v141, %v139
    %v145 = vsel %vm92, %v144, 0.0
    %v146 = vsel %vm93, %v143, 0.0
    %148 = vset.pattern.permute.xlu0 0
    %149 = vperm.xlu0 %148, %v31
    %v150 = vpop.permute.xlu0 %149
    %v152 = vmul.f32 %v145, %v150
    %v153 = vmul.f32 %v146, %v150
    %v154 = vadd.f32 %v118, %v152
    %v155 = vadd.f32 %v119, %v153
    %157 = vset.pattern.permute.xlu0 0
    %158 = vperm.xlu0 %157, %v49
    %v159 = vpop.permute.xlu0 %158
    %v161 = vmul.f32 %v145, %v159
    %v162 = vmul.f32 %v146, %v159
    %v163 = vadd.f32 %v127, %v161
    %v164 = vadd.f32 %v128, %v162
    %166 = vset.pattern.permute.xlu0 0
    %167 = vperm.xlu0 %166, %v67
    %v168 = vpop.permute.xlu0 %167
    %v170 = vmul.f32 %v145, %v168
    %v171 = vmul.f32 %v146, %v168
    %v172 = vadd.f32 %v136, %v170
    %v173 = vadd.f32 %v137, %v171
    %174 = vrot.lane.b32.xlu0 %v27, 15
    %v175 = vpop.permute.xlu0 %174
    %176 = vrot.lane.b32.xlu0 %v28, 15
    %v177 = vpop.permute.xlu0 %176
    %vm178 = vcmp.lt.s32.totalorder %v86, 15
    %v179 = vsel %vm178, %v175, %v177
    %v180 = vsel %vm178, %v177, %v175
    %vm181 = vmand %vm92, %vm98
    %vm182 = vmand %vm93, %vm99
    %v183 = vsel %vm181, %v180, 0.0
    %v184 = vsel %vm182, %v179, 0.0
    %186 = vset.pattern.permute.xlu0 0
    %187 = vperm.xlu0 %186, %v33
    %v188 = vpop.permute.xlu0 %187
    %v190 = vmul.f32 %v183, %v188
    %v191 = vmul.f32 %v184, %v188
    %v192 = vadd.f32 %v154, %v190
    %v193 = vadd.f32 %v155, %v191
    %195 = vset.pattern.permute.xlu0 0
    %196 = vperm.xlu0 %195, %v51
    %v197 = vpop.permute.xlu0 %196
    %v199 = vmul.f32 %v183, %v197
    %v200 = vmul.f32 %v184, %v197
    %v201 = vadd.f32 %v163, %v199
    %v202 = vadd.f32 %v164, %v200
    %204 = vset.pattern.permute.xlu0 0
    %205 = vperm.xlu0 %204, %v69
    %v206 = vpop.permute.xlu0 %205
    %v208 = vmul.f32 %v183, %v206
    %v209 = vmul.f32 %v184, %v206
    %v210 = vadd.f32 %v172, %v208
    %v211 = vadd.f32 %v173, %v209
    %212 = vrot.lane.b32.xlu0 %v27, 1
    %v213 = vpop.permute.xlu0 %212
    %214 = vrot.lane.b32.xlu0 %v28, 1
    %v215 = vpop.permute.xlu0 %214
    %vm216 = vcmp.lt.s32.totalorder %v86, 1
    %v217 = vsel %vm216, %v213, %v215
    %v218 = vsel %vm216, %v215, %v213
    %v219 = vsel %vm96, %v218, 0.0
    %v220 = vsel %vm97, %v217, 0.0
    %222 = vset.pattern.permute.xlu0 0
    %223 = vperm.xlu0 %222, %v35
    %v224 = vpop.permute.xlu0 %223
    %v226 = vmul.f32 %v219, %v224
    %v227 = vmul.f32 %v220, %v224
    %v228 = vadd.f32 %v192, %v226
    %v229 = vadd.f32 %v193, %v227
    %231 = vset.pattern.permute.xlu0 0
    %232 = vperm.xlu0 %231, %v53
    %v233 = vpop.permute.xlu0 %232
    %v235 = vmul.f32 %v219, %v233
    %v236 = vmul.f32 %v220, %v233
    %v237 = vadd.f32 %v201, %v235
    %v238 = vadd.f32 %v202, %v236
    %240 = vset.pattern.permute.xlu0 0
    %241 = vperm.xlu0 %240, %v71
    %v242 = vpop.permute.xlu0 %241
    %v244 = vmul.f32 %v219, %v242
    %v245 = vmul.f32 %v220, %v242
    %v246 = vadd.f32 %v210, %v244
    %v247 = vadd.f32 %v211, %v245
    %249 = vset.pattern.permute.xlu0 0
    %250 = vperm.xlu0 %249, %v37
    %v251 = vpop.permute.xlu0 %250
    %v253 = vmul.f32 %v27, %v251
    %v254 = vmul.f32 %v28, %v251
    %v255 = vadd.f32 %v228, %v253
    %v256 = vadd.f32 %v229, %v254
    %258 = vset.pattern.permute.xlu0 0
    %259 = vperm.xlu0 %258, %v55
    %v260 = vpop.permute.xlu0 %259
    %v262 = vmul.f32 %v27, %v260
    %v263 = vmul.f32 %v28, %v260
    %v264 = vadd.f32 %v237, %v262
    %v265 = vadd.f32 %v238, %v263
    %267 = vset.pattern.permute.xlu0 0
    %268 = vperm.xlu0 %267, %v73
    %v269 = vpop.permute.xlu0 %268
    %v271 = vmul.f32 %v27, %v269
    %v272 = vmul.f32 %v28, %v269
    %v273 = vadd.f32 %v246, %v271
    %v274 = vadd.f32 %v247, %v272
    %275 = vrot.lane.b32.xlu0 %v27, 127
    %v276 = vpop.permute.xlu0 %275
    %277 = vrot.lane.b32.xlu0 %v28, 127
    %v278 = vpop.permute.xlu0 %277
    %vm279 = vcmp.lt.s32.totalorder %v86, 127
    %v280 = vsel %vm279, %v276, %v278
    %v281 = vsel %vm279, %v278, %v276
    %v282 = vsel %vm98, %v280, 0.0
    %v283 = vsel %vm99, %v281, 0.0
    %285 = vset.pattern.permute.xlu0 0
    %286 = vperm.xlu0 %285, %v39
    %v287 = vpop.permute.xlu0 %286
    %v289 = vmul.f32 %v282, %v287
    %v290 = vmul.f32 %v283, %v287
    %v291 = vadd.f32 %v255, %v289
    %v292 = vadd.f32 %v256, %v290
    %294 = vset.pattern.permute.xlu0 0
    %295 = vperm.xlu0 %294, %v57
    %v296 = vpop.permute.xlu0 %295
    %v298 = vmul.f32 %v282, %v296
    %v299 = vmul.f32 %v283, %v296
    %v300 = vadd.f32 %v264, %v298
    %v301 = vadd.f32 %v265, %v299
    %303 = vset.pattern.permute.xlu0 0
    %304 = vperm.xlu0 %303, %v75
    %v305 = vpop.permute.xlu0 %304
    %v307 = vmul.f32 %v282, %v305
    %v308 = vmul.f32 %v283, %v305
    %v309 = vadd.f32 %v273, %v307
    %v310 = vadd.f32 %v274, %v308
    %311 = vrot.lane.b32.xlu0 %v27, 113
    %v312 = vpop.permute.xlu0 %311
    %313 = vrot.lane.b32.xlu0 %v28, 113
    %v314 = vpop.permute.xlu0 %313
    %vm315 = vcmp.lt.s32.totalorder %v86, 113
    %v316 = vsel %vm315, %v312, %v314
    %v317 = vsel %vm315, %v314, %v312
    %vm318 = vmand %vm94, %vm96
    %vm319 = vmand %vm95, %vm97
    %v320 = vsel %vm318, %v316, 0.0
    %v321 = vsel %vm319, %v317, 0.0
    %323 = vset.pattern.permute.xlu0 0
    %324 = vperm.xlu0 %323, %v41
    %v325 = vpop.permute.xlu0 %324
    %v327 = vmul.f32 %v320, %v325
    %v328 = vmul.f32 %v321, %v325
    %v329 = vadd.f32 %v291, %v327
    %v330 = vadd.f32 %v292, %v328
    %332 = vset.pattern.permute.xlu0 0
    %333 = vperm.xlu0 %332, %v59
    %v334 = vpop.permute.xlu0 %333
    %v336 = vmul.f32 %v320, %v334
    %v337 = vmul.f32 %v321, %v334
    %v338 = vadd.f32 %v300, %v336
    %v339 = vadd.f32 %v301, %v337
    %341 = vset.pattern.permute.xlu0 0
    %342 = vperm.xlu0 %341, %v77
    %v343 = vpop.permute.xlu0 %342
    %v345 = vmul.f32 %v320, %v343
    %v346 = vmul.f32 %v321, %v343
    %v347 = vadd.f32 %v309, %v345
    %v348 = vadd.f32 %v310, %v346
    %349 = vrot.lane.b32.xlu0 %v27, 112
    %v350 = vpop.permute.xlu0 %349
    %351 = vrot.lane.b32.xlu0 %v28, 112
    %v352 = vpop.permute.xlu0 %351
    %vm353 = vcmp.lt.s32.totalorder %v86, 112
    %v354 = vsel %vm353, %v350, %v352
    %v355 = vsel %vm353, %v352, %v350
    %v356 = vsel %vm94, %v354, 0.0
    %v357 = vsel %vm95, %v355, 0.0
    %359 = vset.pattern.permute.xlu0 0
    %360 = vperm.xlu0 %359, %v43
    %v361 = vpop.permute.xlu0 %360
    %v363 = vmul.f32 %v356, %v361
    %v364 = vmul.f32 %v357, %v361
    %v365 = vadd.f32 %v329, %v363
    %v366 = vadd.f32 %v330, %v364
    %368 = vset.pattern.permute.xlu0 0
    %369 = vperm.xlu0 %368, %v61
    %v370 = vpop.permute.xlu0 %369
    %v372 = vmul.f32 %v356, %v370
    %v373 = vmul.f32 %v357, %v370
    %v374 = vadd.f32 %v338, %v372
    %v375 = vadd.f32 %v339, %v373
    %377 = vset.pattern.permute.xlu0 0
    %378 = vperm.xlu0 %377, %v79
    %v379 = vpop.permute.xlu0 %378
    %v381 = vmul.f32 %v356, %v379
    %v382 = vmul.f32 %v357, %v379
    %v383 = vadd.f32 %v347, %v381
    %v384 = vadd.f32 %v348, %v382
    %385 = vrot.lane.b32.xlu0 %v27, 111
    %v386 = vpop.permute.xlu0 %385
    %387 = vrot.lane.b32.xlu0 %v28, 111
    %v388 = vpop.permute.xlu0 %387
    %vm389 = vcmp.lt.s32.totalorder %v86, 111
    %v390 = vsel %vm389, %v386, %v388
    %v391 = vsel %vm389, %v388, %v386
    %vm392 = vmand %vm94, %vm98
    %vm393 = vmand %vm95, %vm99
    %v394 = vsel %vm392, %v390, 0.0
    %v395 = vsel %vm393, %v391, 0.0
    %397 = vset.pattern.permute.xlu0 0
    %398 = vperm.xlu0 %397, %v45
    %v399 = vpop.permute.xlu0 %398
    %v401 = vmul.f32 %v394, %v399
    %v402 = vmul.f32 %v395, %v399
    %v403 = vadd.f32 %v365, %v401
    %v404 = vadd.f32 %v366, %v402
    %406 = vset.pattern.permute.xlu0 0
    %407 = vperm.xlu0 %406, %v63
    %v408 = vpop.permute.xlu0 %407
    %v410 = vmul.f32 %v394, %v408
    %v411 = vmul.f32 %v395, %v408
    %v412 = vadd.f32 %v374, %v410
    %v413 = vadd.f32 %v375, %v411
    %415 = vset.pattern.permute.xlu0 0
    %416 = vperm.xlu0 %415, %v81
    %v417 = vpop.permute.xlu0 %416
    %v419 = vmul.f32 %v394, %v417
    %v420 = vmul.f32 %v395, %v417
    %v421 = vadd.f32 %v383, %v419
    %v422 = vadd.f32 %v384, %v420
    %423 = vst [vmem:[#allocation2] sm:$0x3f] %v403
    %424 = vst [vmem:[#allocation2 + $0x8] sm:$0x3f] %v404
    %s425 = scalar_lea.vmem [#allocation2], 16
    %426 = vst [vmem:[%s425] sm:$0x3f] %v412
    %427 = vst [vmem:[%s425 + $0x8] sm:$0x3f] %v413
    %s428 = scalar_lea.vmem [#allocation2], 32
    %429 = vst [vmem:[%s428] sm:$0x3f] %v421
    %430 = vst [vmem:[%s428 + $0x8] sm:$0x3f] %v422
    %v431 = vld [vmem:[#allocation2] ss:$8 sm:$0x3]
    %s432 = scalar_lea.vmem [#allocation2], 1
    %v433 = vld [vmem:[%s432] ss:$8 sm:$0x3]
    %v434 = vadd.f32 %v431, %v433
    %s435 = scalar_lea.vmem [#allocation2], 2
    %v436 = vld [vmem:[%s435] ss:$8 sm:$0x3]
    %v437 = vadd.f32 %v434, %v436
    %v438 = vstv %s82
    %v439 = vadd.f32 %v437, %v438
    %v440 = vtanh.pop %v439
    %v441 = vlaneseq
    %vm442 = vcmp.ge.s32.totalorder %v441, 0
    %vm443 = vcmp.lt.s32.totalorder %v441, 256
    %vm444 = vmand %vm442, %vm443
    %445 = vst.msk [vmem:[%s3] ss:$4 sm:$0x3] %vm444, %v440
    %v446 = vld [vmem:[%s425] ss:$8 sm:$0x3]
    %s447 = scalar_lea.vmem %s425, 1 [#allocation2]
    %v448 = vld [vmem:[%s447] ss:$8 sm:$0x3]
    %v449 = vadd.f32 %v446, %v448
    %s450 = scalar_lea.vmem %s425, 2 [#allocation2]
    %v451 = vld [vmem:[%s450] ss:$8 sm:$0x3]
    %v452 = vadd.f32 %v449, %v451
    %v453 = vstv %s83
    %v454 = vadd.f32 %v452, %v453
    %v455 = vtanh.pop %v454
    %s456 = scalar_lea.vmem %s3, 1
    %457 = vst.msk [vmem:[%s456] ss:$4 sm:$0x3] %vm444, %v455
    %v458 = vld [vmem:[%s428] ss:$8 sm:$0x3]
    %s459 = scalar_lea.vmem %s428, 1 [#allocation2]
    %v460 = vld [vmem:[%s459] ss:$8 sm:$0x3]
    %v461 = vadd.f32 %v458, %v460
    %s462 = scalar_lea.vmem %s428, 2 [#allocation2]
    %v463 = vld [vmem:[%s462] ss:$8 sm:$0x3]
    %v464 = vadd.f32 %v461, %v463
    %v465 = vstv %s84
    %v466 = vadd.f32 %v464, %v465
    %v467 = vtanh.pop %v466
    %s468 = scalar_lea.vmem %s3, 2
    %469 = vst.msk [vmem:[%s468] ss:$4 sm:$0x3] %vm444, %v467
    %s470 = scalar_lea.vmem [#allocation2], 3
    %v471 = vld [vmem:[%s470] ss:$8 sm:$0x3]
    %s472 = scalar_lea.vmem [#allocation2], 4
    %v473 = vld [vmem:[%s472] ss:$8 sm:$0x3]
    %v474 = vadd.f32 %v471, %v473
    %s475 = scalar_lea.vmem [#allocation2], 5
    %v476 = vld [vmem:[%s475] ss:$8 sm:$0x3]
    %v477 = vadd.f32 %v474, %v476
    %v478 = vadd.f32 %v477, %v438
    %v479 = vtanh.pop %v478
    %s480 = scalar_lea.vmem %s3, 8
    %481 = vst.msk [vmem:[%s480] ss:$4 sm:$0x3] %vm444, %v479
    %s482 = scalar_lea.vmem %s425, 3 [#allocation2]
    %v483 = vld [vmem:[%s482] ss:$8 sm:$0x3]
    %s484 = scalar_lea.vmem %s425, 4 [#allocation2]
    %v485 = vld [vmem:[%s484] ss:$8 sm:$0x3]
    %v486 = vadd.f32 %v483, %v485
    %s487 = scalar_lea.vmem %s425, 5 [#allocation2]
    %v488 = vld [vmem:[%s487] ss:$8 sm:$0x3]
    %v489 = vadd.f32 %v486, %v488
    %v490 = vadd.f32 %v489, %v453
    %v491 = vtanh.pop %v490
    %s492 = scalar_lea.vmem %s480, 1
    %493 = vst.msk [vmem:[%s492] ss:$4 sm:$0x3] %vm444, %v491
    %s494 = scalar_lea.vmem %s428, 3 [#allocation2]
    %v495 = vld [vmem:[%s494] ss:$8 sm:$0x3]
    %s496 = scalar_lea.vmem %s428, 4 [#allocation2]
    %v497 = vld [vmem:[%s496] ss:$8 sm:$0x3]
    %v498 = vadd.f32 %v495, %v497
    %s499 = scalar_lea.vmem %s428, 5 [#allocation2]
    %v500 = vld [vmem:[%s499] ss:$8 sm:$0x3]
    %v501 = vadd.f32 %v498, %v500
    %v502 = vadd.f32 %v501, %v465
    %v503 = vtanh.pop %v502
    %s504 = scalar_lea.vmem %s480, 2
    %505 = vst.msk [vmem:[%s504] ss:$4 sm:$0x3] %vm444, %v503
    // Predicated region
    $region18: #{tpu_custom_call.1} parent=1 // pred_check
      _
    $region19: #{tpu_custom_call.1} parent=1 // pred_check_branch
      %507 = sbr.rel (0) target = $region21
    $region20: #{tpu_custom_call.1} parent=1 // pred_region
      _
    $region21: #{tpu_custom_call.1} parent=1 // pred_fallthru
      _
    // Predicated region
    $region22: #{tpu_custom_call.1} parent=1 // pred_check
      _
    $region23: #{tpu_custom_call.1} parent=1 // pred_check_branch
      %509 = sbr.rel (0) target = $region25
    $region24: #{tpu_custom_call.1} parent=1 // pred_region
      _
    $region25: #{tpu_custom_call.1} parent=1 // pred_fallthru
      _
    %510 = vsyncpa [#allocation4], 1

</llo_original>
